<compile_context>
chip_gen: v5e
topology: v5e:2x2
jax: 0.10.0
libtpu: 0.0.40
codegen_flags: <defaults>
</compile_context>

<pallas_src>
import math

import jax
import jax.numpy as jnp
from jax.experimental import pallas as pl
from jax.experimental.pallas import tpu as pltpu

_INV_SQRT2 = 1.0 / math.sqrt(2.0)


def _round_up(x, m):
    return -(-x // m) * m


def _vmem_capacity_bytes():
    """Physical VMEM per core (128 MiB v5e/v6e, 64 MiB v7x); conservative fallback."""
    try:
        info = pltpu.get_tpu_info()
        for name in ("vmem_capacity_bytes", "vmem_size_bytes", "vmem_bytes"):
            v = getattr(info, name, None)
            if v:
                return int(v)
    except Exception:
        pass
    return 64 * 1024 * 1024


# ------------------------------ Pallas kernel ------------------------------ #
def _residual_add_kernel(xf_ref, xp_ref, wf_ref, wp_ref, b_ref, o_ref):
    """One fused tile:  out = GELU(x_fn @ Wf + bf) + (x_pool @ Wp + bp).

    xf_ref : (TM, g*Cin)    bf16, g pixels packed per row (fn branch input)
    xp_ref : (TM, g*Cin)    bf16, g pixels packed per row (pool branch input)
    wf_ref : (g*Cin, g*Cout) bf16, kron(I_g, Wf * bn_scale_f)
    wp_ref : (g*Cin, g*Cout) bf16, kron(I_g, Wp * bn_scale_p)
    b_ref  : (2, g*Cout)    f32 folded BN biases, tiled over the g packed pixels
    o_ref  : (TM, g*Cout)   f32, lane-dense packed output tile (no padding columns)
    """
    # fn branch: bf16 MXU matmul, f32 accumulation, bias + exact (erf) GELU.
    yf = jnp.dot(xf_ref[...], wf_ref[...], preferred_element_type=jnp.float32)
    yf = yf + b_ref[0, :]
    yf = 0.5 * yf * (1.0 + jax.lax.erf(yf * jnp.float32(_INV_SQRT2)))

    # proj branch: matmul + bias only.
    yp = jnp.dot(xp_ref[...], wp_ref[...], preferred_element_type=jnp.float32)
    yp = yp + b_ref[1, :]

    o_ref[...] = (yf + yp).astype(o_ref.dtype)


def _act_block_spec(block_shape, index_map, n_buffers):
    """Activation BlockSpec, with optional 3-deep pipelining (graceful fallback)."""
    if n_buffers > 2:
        try:
            return pl.BlockSpec(block_shape, index_map,
                                pipeline_mode=pl.Buffered(n_buffers))
        except TypeError:
            pass  # pipeline_mode not supported in this jax build -> default dbl-buffer
    return pl.BlockSpec(block_shape, index_map)


def residual_add_pallas(x_fn, x_pool, w_fn_pack, w_pr_pack, bias, g, *, tm_rows=None):
    """x_fn / x_pool: (M, Cin) bf16 branch inputs (one row per output pixel).
    w_*_pack: (g*Cin, g*Cout) bf16; bias: (2, g*Cout) f32.  Returns (M, Cout) f32."""
    M, cin = x_fn.shape
    gk, gn = w_fn_pack.shape
    assert x_pool.shape == (M, cin) and gk == g * cin
    assert w_pr_pack.shape == (gk, gn) and bias.shape == (2, gn)
    out_c = gn // g

    mg = -(-M // g)                                   # packed rows (g pixels per row)
    act_itemsize = jnp.dtype(x_fn.dtype).itemsize

    # --- VMEM accounting with physical (8, 128) tile padding -------------------------
    gk_pad = _round_up(gk, 128)
    gn_pad = _round_up(gn, 128)
    per_row = (2 * 3 * gk_pad * act_itemsize          # 2 activation tiles, <=3 buffers each
               + 2 * gn_pad * 4                       # f32 output tile, double buffered
               + 2 * gn_pad * 4)                      # f32 epilogue temporaries (yf, yp)
    resident = (2 * 2 * _round_up(gk, 8) * gn_pad * jnp.dtype(w_fn_pack.dtype).itemsize
                + 2 * _round_up(2, 8) * gn_pad * 4)   # weights + bias, x2 (dbl-buffered)
    vmem_cap = _vmem_capacity_bytes()
    budget = vmem_cap // 2 - (8 << 20)                # leave half + headroom for Mosaic
    rows_cap = max(8, int((budget - resident) // per_row) // 8 * 8)

    # --- row tile: big enough for bandwidth, small enough for >=8 grid steps ---------
    rows_8steps = _round_up(max(8, -(-mg // 8)), 8)
    if tm_rows is None:
        tm_rows = min(512, rows_cap, rows_8steps)
    tm_rows = max(8, (int(tm_rows) // 8) * 8)

    mg_pad = _round_up(mg, tm_rows)
    m_pad = mg_pad * g
    if m_pad != M:
        x_fn = jnp.pad(x_fn, ((0, m_pad - M), (0, 0)))
        x_pool = jnp.pad(x_pool, ((0, m_pad - M), (0, 0)))
    xf = x_fn.reshape(mg_pad, gk)                     # free reshape (row-major)
    xp = x_pool.reshape(mg_pad, gk)

    steps = mg_pad // tm_rows
    n_act_buf = 3 if steps >= 4 else 2                # deeper buffering only when useful

    vmem_limit = resident + per_row * tm_rows + (4 << 20)
    vmem_limit = int(min(max(vmem_limit, 16 << 20), vmem_cap - (4 << 20)))

    grid_spec = pltpu.PrefetchScalarGridSpec(
        num_scalar_prefetch=0,
        grid=(steps,),
        in_specs=[
            _act_block_spec((tm_rows, gk), lambda i: (i, 0), n_act_buf),  # x_fn packed
            _act_block_spec((tm_rows, gk), lambda i: (i, 0), n_act_buf),  # x_pool packed
            pl.BlockSpec((gk, gn), lambda i: (0, 0)),                     # fn weight (resident)
            pl.BlockSpec((gk, gn), lambda i: (0, 0)),                     # proj weight (resident)
            pl.BlockSpec((2, gn), lambda i: (0, 0)),                      # biases (resident)
        ],
        out_specs=pl.BlockSpec((tm_rows, gn), lambda i: (i, 0)),
    )
    out = pl.pallas_call(
        _residual_add_kernel,
        out_shape=jax.ShapeDtypeStruct((mg_pad, gn), jnp.float32),
        grid_spec=grid_spec,
        compiler_params=pltpu.CompilerParams(
            dimension_semantics=("parallel",),
            vmem_limit_bytes=vmem_limit,
        ),
    )(xf, xp, w_fn_pack, w_pr_pack, bias)
    # (mg_pad, g*out_c) -> (m_pad, out_c) is a free contiguous reshape; drop row padding.
    return out.reshape(m_pad, out_c)[:M]


# ------------------------------ params / glue ------------------------------ #
def fold_bn(gamma, beta, mean, var, eps=1e-5):
    scale = gamma / jnp.sqrt(var + eps)
    return scale, beta - mean * scale


def make_params(key, in_c, out_c):
    """Raw parameters as the PyTorch module holds them (eval-mode BN stats)."""
    ks = jax.random.split(key, 10)
    # Conv2d(in_c, out_c, 1, bias=False) weight (out_c, in_c, 1, 1) -> stored as (in_c, out_c)
    w_fn = (jax.random.normal(ks[0], (out_c, in_c), jnp.float32) * 0.2).T
    w_proj = (jax.random.normal(ks[1], (out_c, in_c), jnp.float32) * 0.2).T

    def bn(k0, k1, k2, k3):
        gamma = 1.0 + 0.1 * jax.random.normal(k0, (out_c,), jnp.float32)
        beta = 0.1 * jax.random.normal(k1, (out_c,), jnp.float32)
        mean = 0.1 * jax.random.normal(k2, (out_c,), jnp.float32)
        var = 1.0 + 0.1 * jax.nn.softplus(jax.random.normal(k3, (out_c,), jnp.float32))
        return gamma, beta, mean, var

    return {"w_fn": w_fn, "bn_fn": bn(*ks[2:6]),
            "w_proj": w_proj, "bn_proj": bn(*ks[6:10])}


def fuse_params(params, in_c, out_c):
    """Fold BN scale into the conv weights and build the pixel-packed, bf16 weights."""
    # packing factor: g pixels share one lane row so the output is (near) lane-dense
    g = max(1, 128 // out_c) if out_c < 128 else 1
    sf, bf = fold_bn(*params["bn_fn"])
    sp, bp = fold_bn(*params["bn_proj"])
    wf = params["w_fn"] * sf[None, :]                 # (in_c, out_c), BN scale folded (f32)
    wp = params["w_proj"] * sp[None, :]
    eye = jnp.eye(g, dtype=jnp.float32)
    w_fn_pack = jnp.kron(eye, wf).astype(jnp.bfloat16)   # (g*in_c, g*out_c) block-diag
    w_pr_pack = jnp.kron(eye, wp).astype(jnp.bfloat16)
    bias = jnp.stack([jnp.tile(bf, g), jnp.tile(bp, g)]).astype(jnp.float32)  # (2, g*out_c)
    return {"w_fn": w_fn_pack, "w_proj": w_pr_pack, "bias": bias,
            "in_c": in_c, "out_c": out_c, "g": g}


def residual_add_forward(x_nchw, fused, stride):
    """Full ResidualAdd forward (projected path). (N,Cin,H,W) -> (N,Cout,Ho,Wo)."""
    n, cin, h, w = x_nchw.shape
    assert cin == fused["in_c"]
    # PyTorch itself would fail here (conv ceil vs avgpool floor mismatch) -> require divisibility.
    assert h % stride == 0 and w % stride == 0, "H and W must be divisible by stride"
    cout, g = fused["out_c"], fused["g"]
    ho, wo = h // stride, w // stride

    x_nhwc = jnp.transpose(x_nchw, (0, 2, 3, 1))                     # NCHW -> NHWC
    # fn branch input: 1x1 conv with stride s just subsamples pixels
    x_fn = x_nhwc[:, ::stride, ::stride, :]
    # proj branch input: AvgPool2d(stride) (kernel == stride, no padding)
    x_pool = x_nhwc.reshape(n, ho, stride, wo, stride, cin).mean(axis=(2, 4))

    # bf16 operands for the MXU; XLA fuses the casts into the producer pass above.
    xf = x_fn.reshape(n * ho * wo, cin).astype(jnp.bfloat16)
    xp = x_pool.reshape(n * ho * wo, cin).astype(jnp.bfloat16)

    out = residual_add_pallas(xf, xp, fused["w_fn"], fused["w_proj"], fused["bias"], g)
    out = out.reshape(n, ho, wo, cout)
    return jnp.transpose(out, (0, 3, 1, 2))                          # back to NCHW


# -------------------------------- reference -------------------------------- #
def residual_add_ref(x_nchw, params, stride, *, operand_dtype=jnp.float32):
    """Pure-JAX reference. operand_dtype=bfloat16 applies the same operand quantization
    as the kernel (matmul inputs cast to bf16, f32 accumulation / epilogue)."""
    n, cin, h, w = x_nchw.shape
    ho, wo = h // stride, w // stride
    x_nhwc = jnp.transpose(x_nchw, (0, 2, 3, 1))
    x_fn = x_nhwc[:, ::stride, ::stride, :]
    x_pool = x_nhwc.reshape(n, ho, stride, wo, stride, cin).mean(axis=(2, 4))
    sf, bf = fold_bn(*params["bn_fn"])
    sp, bp = fold_bn(*params["bn_proj"])
    wf = params["w_fn"] * sf[None, :]
    wp = params["w_proj"] * sp[None, :]
    if operand_dtype != jnp.float32:
        cast = lambda a: a.astype(operand_dtype).astype(jnp.float32)
        x_fn, x_pool, wf, wp = cast(x_fn), cast(x_pool), cast(wf), cast(wp)
    yf = x_fn @ wf + bf
    yf = 0.5 * yf * (1.0 + jax.lax.erf(yf * jnp.float32(_INV_SQRT2)))
    yp = x_pool @ wp + bp
    return jnp.transpose(yf + yp, (0, 3, 1, 2))


# ----------------------------------- main ----------------------------------- #
if __name__ == "__main__":
    key = jax.random.PRNGKey(0)

    # (N, in_c, H, W, out_c, stride)
    cases = [
        (2, 4, 16, 16, 8, 2),     # tiny channels: g=16 pixel packing, single grid step
        (2, 32, 32, 32, 64, 2),   # g=2 packing, multi-step grid (3-deep pipeline path)
        (2, 64, 16, 16, 128, 2),  # g=1: lane-dense out_c, compact split dots
    ]

    for (N, in_c, H, W, out_c, stride) in cases:
        key, k_x, k_p = jax.random.split(key, 3)
        x = jax.random.normal(k_x, (N, in_c, H, W), jnp.float32)
        params = make_params(k_p, in_c, out_c)
        fused = fuse_params(params, in_c, out_c)

        out = jax.block_until_ready(residual_add_forward(x, fused, stride))
        assert out.shape == (N, out_c, H // stride, W // stride)

        # Tight check vs a reference with the same bf16 operand quantization.
        ref_q = residual_add_ref(x, params, stride, operand_dtype=jnp.bfloat16)
        err_q = float(jnp.max(jnp.abs(out - ref_q)))
        assert jnp.allclose(out, ref_q, atol=5e-3, rtol=5e-3), (out.shape, err_q)

        # Loose sanity check vs the full-f32 reference (bf16 operands => wider tolerance).
        ref_f = residual_add_ref(x, params, stride)
        err_f = float(jnp.max(jnp.abs(out - ref_f)))
        assert jnp.allclose(out, ref_f, atol=2.5e-1, rtol=1e-1), (out.shape, err_f)

    print("KERNEL_OK")
</pallas_src>

<mosaic_0001>
module attributes {stable_mosaic.version = 11 : i64} {
  func.func @_residual_add_kernel(%arg0: i32, %arg1: memref<8x64xbf16, #tpu.memory_space<vmem>>, %arg2: memref<8x64xbf16, #tpu.memory_space<vmem>>, %arg3: memref<64x128xbf16, #tpu.memory_space<vmem>>, %arg4: memref<64x128xbf16, #tpu.memory_space<vmem>>, %arg5: memref<2x128xf32, #tpu.memory_space<vmem>>, %arg6: memref<8x128xf32, #tpu.memory_space<vmem>>) attributes {dimension_semantics = [#tpu.dimension_semantics<parallel>], iteration_bounds = array<i64: 1>, scalar_prefetch = 0 : i64, scratch_operands = 0 : i64, tpu.core_type = #tpu.core_type<tc>, window_params = [{transform_indices = @transform_0, window_bounds = array<i64: 8, 64>}, {transform_indices = @transform_1, window_bounds = array<i64: 8, 64>}, {pipeline_mode = #tpu.pipeline_mode<synchronous>, transform_indices = @transform_2, window_bounds = array<i64: 64, 128>}, {pipeline_mode = #tpu.pipeline_mode<synchronous>, transform_indices = @transform_3, window_bounds = array<i64: 64, 128>}, {pipeline_mode = #tpu.pipeline_mode<synchronous>, transform_indices = @transform_4, window_bounds = array<i64: 2, 128>}, {transform_indices = @transform_5, window_bounds = array<i64: 8, 128>}]} {
    %c0 = arith.constant 0 : index
    %c0_0 = arith.constant 0 : index
    %0 = vector.load %arg1[%c0, %c0_0] : memref<8x64xbf16, #tpu.memory_space<vmem>>, vector<8x64xbf16>
    %c0_1 = arith.constant 0 : index
    %c0_2 = arith.constant 0 : index
    %1 = vector.load %arg3[%c0_1, %c0_2] : memref<64x128xbf16, #tpu.memory_space<vmem>>, vector<64x128xbf16>
    %cst = arith.constant dense<0.000000e+00> : vector<8x128xf32>
    %2 = tpu.matmul %0, %1, %cst {dimension_numbers = #tpu.dot_dimension_numbers<[1], [0], [0], [1], [0, 0, 1, 1], [], []>} : vector<8x64xbf16>, vector<64x128xbf16>, vector<8x128xf32> -> vector<8x128xf32>
    %c0_3 = arith.constant 0 : index
    %c0_4 = arith.constant 0 : index
    %3 = vector.load %arg5[%c0_3, %c0_4] : memref<2x128xf32, #tpu.memory_space<vmem>>, vector<1x128xf32>
    %4 = vector.shape_cast %3 : vector<1x128xf32> to vector<128xf32>
    %5 = vector.shape_cast %4 : vector<128xf32> to vector<1x128xf32>
    %6 = vector.broadcast %5 : vector<1x128xf32> to vector<8x128xf32>
    %7 = arith.addf %2, %6 : vector<8x128xf32>
    %cst_5 = arith.constant 5.000000e-01 : f32
    %8 = vector.broadcast %cst_5 : f32 to vector<8x128xf32>
    %9 = arith.mulf %8, %7 : vector<8x128xf32>
    %cst_6 = arith.constant 0.707106769 : f32
    %10 = vector.broadcast %cst_6 : f32 to vector<8x128xf32>
    %11 = arith.mulf %7, %10 : vector<8x128xf32>
    %12 = math.erf %11 : vector<8x128xf32>
    %cst_7 = arith.constant 1.000000e+00 : f32
    %13 = vector.broadcast %cst_7 : f32 to vector<8x128xf32>
    %14 = arith.addf %13, %12 : vector<8x128xf32>
    %15 = arith.mulf %9, %14 : vector<8x128xf32>
    %c0_8 = arith.constant 0 : index
    %c0_9 = arith.constant 0 : index
    %16 = vector.load %arg2[%c0_8, %c0_9] : memref<8x64xbf16, #tpu.memory_space<vmem>>, vector<8x64xbf16>
    %c0_10 = arith.constant 0 : index
    %c0_11 = arith.constant 0 : index
    %17 = vector.load %arg4[%c0_10, %c0_11] : memref<64x128xbf16, #tpu.memory_space<vmem>>, vector<64x128xbf16>
    %cst_12 = arith.constant dense<0.000000e+00> : vector<8x128xf32>
    %18 = tpu.matmul %16, %17, %cst_12 {dimension_numbers = #tpu.dot_dimension_numbers<[1], [0], [0], [1], [0, 0, 1, 1], [], []>} : vector<8x64xbf16>, vector<64x128xbf16>, vector<8x128xf32> -> vector<8x128xf32>
    %c1 = arith.constant 1 : index
    %c0_13 = arith.constant 0 : index
    %19 = vector.load %arg5[%c1, %c0_13] : memref<2x128xf32, #tpu.memory_space<vmem>>, vector<1x128xf32>
    %20 = vector.shape_cast %19 : vector<1x128xf32> to vector<128xf32>
    %21 = vector.shape_cast %20 : vector<128xf32> to vector<1x128xf32>
    %22 = vector.broadcast %21 : vector<1x128xf32> to vector<8x128xf32>
    %23 = arith.addf %18, %22 : vector<8x128xf32>
    %24 = arith.addf %15, %23 : vector<8x128xf32>
    %c0_14 = arith.constant 0 : index
    %c0_15 = arith.constant 0 : index
    %25 = vector.load %arg6[%c0_14, %c0_15] : memref<8x128xf32, #tpu.memory_space<vmem>>, vector<8x128xf32>
    tpu.vector_store %arg6[%c0_14, %c0_15], %24 {strides = array<i32>} : memref<8x128xf32, #tpu.memory_space<vmem>>, vector<8x128xf32>,
    return
  }
  func.func @transform_0(%arg0: i32) -> (i32, i32) {
    %c0_i32 = arith.constant 0 : i32
    %c0_i32_0 = arith.constant 0 : i32
    return %arg0, %c0_i32 : i32, i32
  }
  func.func @transform_1(%arg0: i32) -> (i32, i32) {
    %c0_i32 = arith.constant 0 : i32
    %c0_i32_0 = arith.constant 0 : i32
    return %arg0, %c0_i32 : i32, i32
  }
  func.func @transform_2(%arg0: i32) -> (i32, i32) {
    %c0_i32 = arith.constant 0 : i32
    %c0_i32_0 = arith.constant 0 : i32
    %c0_i32_1 = arith.constant 0 : i32
    return %c0_i32, %c0_i32_0 : i32, i32
  }
  func.func @transform_3(%arg0: i32) -> (i32, i32) {
    %c0_i32 = arith.constant 0 : i32
    %c0_i32_0 = arith.constant 0 : i32
    %c0_i32_1 = arith.constant 0 : i32
    return %c0_i32, %c0_i32_0 : i32, i32
  }
  func.func @transform_4(%arg0: i32) -> (i32, i32) {
    %c0_i32 = arith.constant 0 : i32
    %c0_i32_0 = arith.constant 0 : i32
    %c0_i32_1 = arith.constant 0 : i32
    return %c0_i32, %c0_i32_0 : i32, i32
  }
  func.func @transform_5(%arg0: i32) -> (i32, i32) {
    %c0_i32 = arith.constant 0 : i32
    %c0_i32_0 = arith.constant 0 : i32
    return %arg0, %c0_i32 : i32, i32
  }
}

</mosaic_0001>

<llo_original>
// kernel: tpu_custom_call.1
$region0: #{tpu_custom_call.1}
  #allocation0 [shape = 'u32[]', space=smem, size = 0x4, offset = 0x4, fixed_abs, tag = 'smem constant byte address 0x4 - core index']
  #allocation1 [shape = 'u32[72,128]{1,0:T(1,128)}', space=vmem, size = 0x9000, scoped, tag = 'internal scratch']
  %s0 = inlined_call_operand.hbm [shape: bf16[8,64], index: 0, kind: input, shape index: {}]
  %s1 = inlined_call_operand.hbm [shape: bf16[8,64], index: 1, kind: input, shape index: {}]
  %s2 = inlined_call_operand.hbm [shape: bf16[64,128], index: 2, kind: input, shape index: {}]
  %s3 = inlined_call_operand.hbm [shape: bf16[64,128], index: 3, kind: input, shape index: {}]
  %s4 = inlined_call_operand.vmem [shape: f32[2,128], index: 4, kind: input, shape index: {}]
  %s5 = inlined_call_operand.hbm [shape: f32[8,128], index: 5, kind: output, shape index: {}]
  %s6 = sld [smem:[#allocation0]]
  $region46: #{tpu_custom_call.1} parent=0
    _
  %s8 = ssub.s32 1, %s6
  %s9 = scalar_select 0, %s8, %s6
  $region1: #{tpu_custom_call.1} parent=0
    #allocation2 [shape = 'u8[2048]{0}', space=vmem, size = 0x800, scoped, tag = 'input window, operand 0, single buffered']
    #allocation3 [shape = 's32[1]{0}', space=sflag, size = 0x4, scoped, tag = 'scoped memory for tpu_custom_call.1']
    #allocation4 [shape = 's32[1]{0}', space=sflag, size = 0x4, scoped, tag = 'scoped memory for tpu_custom_call.1']
    #allocation5 [shape = 'u8[2048]{0}', space=vmem, size = 0x800, scoped, tag = 'input window, operand 1, single buffered']
    #allocation6 [shape = 's32[1]{0}', space=sflag, size = 0x4, scoped, tag = 'scoped memory for tpu_custom_call.1']
    #allocation7 [shape = 'u8[16384]{0}', space=vmem, size = 0x4000, scoped, tag = 'input window, operand 2, single buffered']
    #allocation8 [shape = 'u8[16384]{0}', space=vmem, size = 0x4000, scoped, tag = 'input window, operand 3, single buffered']
    #allocation9 [shape = 's32[1]{0}', space=sflag, size = 0x4, scoped, tag = 'scoped memory for tpu_custom_call.1']
    #allocation10 [shape = 'u8[4096]{0}', space=vmem, size = 0x1000, scoped, tag = 'output window, operand 0, single buffered']
    %10 = vsyncpa [#allocation3], 0
    %11 = vsyncpa [#allocation6], 0
    %12 = vsyncpa [#allocation9], 0
    %13 = vsyncpa [#allocation4], 0
    // Predicated region
    $region2: #{tpu_custom_call.1} parent=1 // pred_check
      _
    $region3: #{tpu_custom_call.1} parent=1 // pred_check_branch
      %15 = sbr.rel (0) target = $region5
    $region4: #{tpu_custom_call.1} parent=1 // pred_region
      %17 = vsyncadd [#allocation3], 0
      %s19 = sshll.u32 %s0, 4
      %s20 = int_to_ptr.hbm [resolvable:$true] %s19
      %s21 = sshll.u32 [#allocation2], 4
      %s22 = int_to_ptr.vmem [resolvable:$true] %s21
      %24 = dma.hbm_to_vmem [thread:$0]  %s20, 64, %s22, [#allocation3]
    $region5: #{tpu_custom_call.1} parent=1 // pred_fallthru
      _
    // Predicated region
    $region6: #{tpu_custom_call.1} parent=1 // pred_check
      _
    $region7: #{tpu_custom_call.1} parent=1 // pred_check_branch
      %26 = sbr.rel (0) target = $region9
    $region8: #{tpu_custom_call.1} parent=1 // pred_region
      %28 = vsyncadd [#allocation6], 0
      %s30 = sshll.u32 %s1, 4
      %s31 = int_to_ptr.hbm [resolvable:$true] %s30
      %s32 = sshll.u32 [#allocation5], 4
      %s33 = int_to_ptr.vmem [resolvable:$true] %s32
      %35 = dma.hbm_to_vmem [thread:$0]  %s31, 64, %s33, [#allocation6]
    $region9: #{tpu_custom_call.1} parent=1 // pred_fallthru
      _
    // Predicated region
    $region10: #{tpu_custom_call.1} parent=1 // pred_check
      _
    $region11: #{tpu_custom_call.1} parent=1 // pred_check_branch
      %37 = sbr.rel (0) target = $region13
    $region12: #{tpu_custom_call.1} parent=1 // pred_region
      %39 = vsyncadd [#allocation6], 0
      %s40 = sshll.u32 %s2, 4
      %s41 = int_to_ptr.hbm [resolvable:$true] %s40
      %s42 = sshll.u32 [#allocation7], 4
      %s43 = int_to_ptr.vmem [resolvable:$true] %s42
      %48 = dma.hbm_to_vmem [thread:$0]  %s41, 512, %s43, [#allocation6], 64, 64, 4
    $region13: #{tpu_custom_call.1} parent=1 // pred_fallthru
      _
    // Predicated region
    $region14: #{tpu_custom_call.1} parent=1 // pred_check
      _
    $region15: #{tpu_custom_call.1} parent=1 // pred_check_branch
      %50 = sbr.rel (0) target = $region17
    $region16: #{tpu_custom_call.1} parent=1 // pred_region
      %52 = vsyncadd [#allocation9], 0
      %s53 = sshll.u32 %s3, 4
      %s54 = int_to_ptr.hbm [resolvable:$true] %s53
      %s55 = sshll.u32 [#allocation8], 4
      %s56 = int_to_ptr.vmem [resolvable:$true] %s55
      %61 = dma.hbm_to_vmem [thread:$0]  %s54, 512, %s56, [#allocation9], 64, 64, 4
    $region17: #{tpu_custom_call.1} parent=1 // pred_fallthru
      _
    // Predicated region
    $region18: #{tpu_custom_call.1} parent=1 // pred_check
      _
    $region19: #{tpu_custom_call.1} parent=1 // pred_check_branch
      %63 = sbr.rel (0) target = $region21
    $region20: #{tpu_custom_call.1} parent=1 // pred_region
      _
    $region21: #{tpu_custom_call.1} parent=1 // pred_fallthru
      _
    // Predicated region
    $region22: #{tpu_custom_call.1} parent=1 // pred_check
      _
    $region23: #{tpu_custom_call.1} parent=1 // pred_check_branch
      %65 = sbr.rel (0) target = $region25
    $region24: #{tpu_custom_call.1} parent=1 // pred_region
      %67 = dma.done [#allocation3], 64
    $region25: #{tpu_custom_call.1} parent=1 // pred_fallthru
      _
    // Predicated region
    $region26: #{tpu_custom_call.1} parent=1 // pred_check
      _
    $region27: #{tpu_custom_call.1} parent=1 // pred_check_branch
      %69 = sbr.rel (0) target = $region29
    $region28: #{tpu_custom_call.1} parent=1 // pred_region
      %71 = dma.done [#allocation6], 64
    $region29: #{tpu_custom_call.1} parent=1 // pred_fallthru
      _
    // Predicated region
    $region30: #{tpu_custom_call.1} parent=1 // pred_check
      _
    $region31: #{tpu_custom_call.1} parent=1 // pred_check_branch
      %73 = sbr.rel (0) target = $region33
    $region32: #{tpu_custom_call.1} parent=1 // pred_region
      %75 = dma.done [#allocation6], 512
    $region33: #{tpu_custom_call.1} parent=1 // pred_fallthru
      _
    // Predicated region
    $region34: #{tpu_custom_call.1} parent=1 // pred_check
      _
    $region35: #{tpu_custom_call.1} parent=1 // pred_check_branch
      %77 = sbr.rel (0) target = $region37
    $region36: #{tpu_custom_call.1} parent=1 // pred_region
      %79 = dma.done [#allocation9], 512
    $region37: #{tpu_custom_call.1} parent=1 // pred_fallthru
      _
    %v81 = vld [vmem:[#allocation2] sm:$0xf]
    %v82 = vld [vmem:[#allocation7] sm:$0xf]
    %v83 = vld [vmem:[#allocation7 + $0x4] sm:$0xf]
    %v84 = vld [vmem:[#allocation7 + $0x8] sm:$0xf]
    %v85 = vld [vmem:[#allocation7 + $0xc] sm:$0xf]
    %v86 = vld [vmem:[#allocation7 + $0x10] sm:$0xf]
    %v87 = vld [vmem:[#allocation7 + $0x14] sm:$0xf]
    %v88 = vld [vmem:[#allocation7 + $0x18] sm:$0xf]
    %v89 = vld [vmem:[#allocation7 + $0x1c] sm:$0xf]
    %v90 = vld [vmem:[%s4] sm:$0x1]
    %v91 = vperm.slane %v90, 0
    %v100 = vunpack.c.l.b16 %v82
    %v101 = vunpack.c.l.b16 %v83
    %v102 = vunpack.c.l.b16 %v84
    %v103 = vunpack.c.l.b16 %v85
    %v104 = vunpack.c.l.b16 %v86
    %v105 = vunpack.c.l.b16 %v87
    %v106 = vunpack.c.l.b16 %v88
    %v107 = vunpack.c.l.b16 %v89
    %v108 = vpack.c.b16 %v101, %v100
    %v109 = vpack.c.b16 %v103, %v102
    %v110 = vpack.c.b16 %v105, %v104
    %v111 = vpack.c.b16 %v107, %v106
    %vm116 = vcmask 523264
    %v118 = vsel %vm116, %v81, 0
    %120 = vmatpush.bf16.msra.mxu0 0
    %121 = vmatpush.bf16.msra.mxu0 0
    %122 = vmatpush.bf16.msra.mxu0 0
    %123 = vmatpush.bf16.msra.mxu0 0
    %124 = vmatpush.bf16.msra.mxu0 %v111
    %125 = vmatpush.bf16.msra.mxu0 %v110
    %126 = vmatpush.bf16.msra.mxu0 %v109
    %127 = vmatpush.bf16.msra.mxu0 %v108
    %128 = vmatmul.bf16.gmra.mxu0 %v118
    %v129 = vpop.f32.mrf.mxu0
    %v130 = vadd.f32 %v91, %v129
    %v131 = vpop.f32.mrf.mxu0
    %132 = vdwg.mxu0
    %v133 = vmul.f32 %v130, 0.5
    %v134 = vmul.f32 %v130, 0.70710677
    %v135 = vmul.f32 %v134, %v134
    %v136 = vmin.f32 16.0, %v135
    %v137 = vmul.f32 %v136, 2.1237322e-06
    %v138 = vadd.f32 %v137, 0.00028619796
    %v139 = vmul.f32 %v136, %v138
    %v140 = vadd.f32 %v139, 0.0036580483
    %v141 = vmul.f32 %v136, %v140
    %v142 = vadd.f32 %v141, 0.05243302
    %v143 = vmul.f32 %v136, %v142
    %v144 = vadd.f32 %v143, 0.18741608
    %v145 = vmul.f32 %v136, %v144
    %v146 = vadd.f32 %v145, 1.1283791
    %v147 = vmul.f32 %v134, %v146
    %v148 = vmul.f32 %v136, 3.8918573e-05
    %v149 = vadd.f32 %v148, 0.001143296
    %v150 = vmul.f32 %v136, %v149
    %v151 = vadd.f32 %v150, 0.014752088
    %v152 = vmul.f32 %v136, %v151
    %v153 = vadd.f32 %v152, 0.112945676
    %v154 = vmul.f32 %v136, %v153
    %v155 = vadd.f32 %v154, 0.4994258
    %v156 = vmul.f32 %v136, %v155
    %v157 = vadd.f32 %v156, 1.0
    %v158 = vrcp.pop %v157
    %v159 = vmul.f32 %v157, %v158
    %v160 = vsub.f32 1.0, %v159
    %v161 = vmul.f32 %v158, %v160
    %v162 = vadd.f32 %v158, %v161
    %vm163 = vweird.f32 %v157
    %vm164 = vweird.f32 %v158
    %vm165 = vmor %vm163, %vm164
    %v166 = vsel %vm165, %v158, %v162
    %v167 = vand.u32 2147483647, %v157
    %vm168 = vcmp.eq.f32.partialorder %v167, 8.507059e+37
    %v169 = vand.u32 %v157, 2147483648
    %v170 = vor.u32 1.1754944e-38, %v169
    %v171 = vsel %vm168, %v170, %v166
    %v172 = vmul.f32 %v147, %v171
    %v173 = vmin.f32 %v172, 1.0
    %v174 = vmax.f32 %v173, -1.0
    %v175 = vadd.f32 %v174, 1.0
    %v176 = vmul.f32 %v133, %v175
    %v177 = vld [vmem:[#allocation5] sm:$0xf]
    %v178 = vld [vmem:[#allocation8] sm:$0xf]
    %v179 = vld [vmem:[#allocation8 + $0x4] sm:$0xf]
    %v180 = vld [vmem:[#allocation8 + $0x8] sm:$0xf]
    %v181 = vld [vmem:[#allocation8 + $0xc] sm:$0xf]
    %v182 = vld [vmem:[#allocation8 + $0x10] sm:$0xf]
    %v183 = vld [vmem:[#allocation8 + $0x14] sm:$0xf]
    %v184 = vld [vmem:[#allocation8 + $0x18] sm:$0xf]
    %v185 = vld [vmem:[#allocation8 + $0x1c] sm:$0xf]
    %v186 = vld [vmem:[%s4 + $0x1] sm:$0x1]
    %v187 = vperm.slane %v186, 0
    %v196 = vunpack.c.l.b16 %v178
    %v197 = vunpack.c.l.b16 %v179
    %v198 = vunpack.c.l.b16 %v180
    %v199 = vunpack.c.l.b16 %v181
    %v200 = vunpack.c.l.b16 %v182
    %v201 = vunpack.c.l.b16 %v183
    %v202 = vunpack.c.l.b16 %v184
    %v203 = vunpack.c.l.b16 %v185
    %v204 = vpack.c.b16 %v197, %v196
    %v205 = vpack.c.b16 %v199, %v198
    %v206 = vpack.c.b16 %v201, %v200
    %v207 = vpack.c.b16 %v203, %v202
    %v213 = vsel %vm116, %v177, 0
    %215 = vmatpush.bf16.msra.mxu0 0
    %216 = vmatpush.bf16.msra.mxu0 0
    %217 = vmatpush.bf16.msra.mxu0 0
    %218 = vmatpush.bf16.msra.mxu0 0
    %219 = vmatpush.bf16.msra.mxu0 %v207
    %220 = vmatpush.bf16.msra.mxu0 %v206
    %221 = vmatpush.bf16.msra.mxu0 %v205
    %222 = vmatpush.bf16.msra.mxu0 %v204
    %223 = vmatmul.bf16.gmra.mxu0 %v213
    %v224 = vpop.f32.mrf.mxu0
    %v225 = vadd.f32 %v187, %v224
    %v226 = vpop.f32.mrf.mxu0
    %227 = vdwg.mxu0
    %v228 = vadd.f32 %v176, %v225
    %229 = vst [vmem:[#allocation10] sm:$0xff] %v228
    // Predicated region
    $region38: #{tpu_custom_call.1} parent=1 // pred_check
      _
    $region39: #{tpu_custom_call.1} parent=1 // pred_check_branch
      %231 = sbr.rel (0) target = $region41
    $region40: #{tpu_custom_call.1} parent=1 // pred_region
      %233 = vsyncadd [#allocation4], 0
      %s235 = sshll.u32 [#allocation10], 4
      %s236 = int_to_ptr.vmem [resolvable:$true] %s235
      %s237 = sshll.u32 %s5, 4
      %s238 = int_to_ptr.hbm [resolvable:$true] %s237
      %240 = dma.vmem_to_hbm [thread:$0]  %s236, 128, %s238, [#allocation4]
    $region41: #{tpu_custom_call.1} parent=1 // pred_fallthru
      _
    // Predicated region
    $region42: #{tpu_custom_call.1} parent=1 // pred_check
      _
    $region43: #{tpu_custom_call.1} parent=1 // pred_check_branch
      %242 = sbr.rel (0) target = $region45
    $region44: #{tpu_custom_call.1} parent=1 // pred_region
      %244 = dma.done [#allocation4], 128
    $region45: #{tpu_custom_call.1} parent=1 // pred_fallthru
      _
    %245 = vsyncpa [#allocation3], 1
    %246 = vsyncpa [#allocation6], 1
    %247 = vsyncpa [#allocation9], 1
    %248 = vsyncpa [#allocation4], 1

</llo_original>
